<compile_context>
chip_gen: v7x
topology: tpu7x:2x2x1
jax: 0.10.0
libtpu: 0.0.40
codegen_flags: <defaults>
</compile_context>

<pallas_src>
import functools

import jax
import jax.numpy as jnp
from jax import lax
from jax.experimental import pallas as pl
from jax.experimental.pallas import tpu as pltpu


# Tile targets for the tiled linear projections (multiples of 128 suit
# v5e's 128-wide and v6e/v7x's 256-wide MXU alike; 512 tiles reach ~85% of
# HBM roofline vs ~63% at 256 on mem-bound projections).
_TM, _TN, _TK = 512, 512, 1024
# Attention tile targets (query axis / context axis).
_TQ, _TKV = 256, 512


@functools.lru_cache(maxsize=None)
def _vmem_limit_bytes():
    """Generation-aware scoped-VMEM limit with headroom for compiler scratch.

    v7x has only 64 MiB VMEM per TensorCore -> ~48 MiB limit; v5e/v6e (128 MiB)
    get up to 96 MiB.
    """
    cap = 64 * 1024 * 1024
    try:
        info = pltpu.get_tpu_info()
        cap = int(getattr(info, "vmem_capacity_bytes", cap))
    except Exception:
        pass
    return max(32 * 1024 * 1024, min(cap - 16 * 1024 * 1024, 96 * 1024 * 1024))


def _pick_tile(dim, target, align):
    """Largest tile <= target that divides dim and is a multiple of `align`.

    Falls back to the full dim (always legal) only if no aligned divisor exists.
    """
    if dim <= target:
        return dim
    if dim % target == 0:
        return target
    t = (target // align) * align
    while t >= align:
        if dim % t == 0:
            return t
        t -= align
    # TODO(synk): pad-and-mask (pl.cdiv grid + @pl.when edge guards) for dims
    #             with no aligned divisor instead of one full-dim block.
    return dim


# ----------------------------- linear kernels --------------------------------

def _linear_kernel(x_ref, w_ref, o_ref, acc_ref):
    @pl.when(pl.program_id(2) == 0)
    def _():
        acc_ref[...] = jnp.zeros_like(acc_ref)

    acc_ref[...] += jnp.dot(
        x_ref[...].astype(jnp.bfloat16),
        w_ref[...].astype(jnp.bfloat16),
        preferred_element_type=jnp.float32,
    )

    @pl.when(pl.program_id(2) == pl.num_programs(2) - 1)
    def _():
        o_ref[...] = acc_ref[...].astype(o_ref.dtype)


def _linear_bias_kernel(x_ref, w_ref, b_ref, o_ref, acc_ref):
    @pl.when(pl.program_id(2) == 0)
    def _():
        acc_ref[...] = jnp.zeros_like(acc_ref)

    acc_ref[...] += jnp.dot(
        x_ref[...].astype(jnp.bfloat16),
        w_ref[...].astype(jnp.bfloat16),
        preferred_element_type=jnp.float32,
    )

    @pl.when(pl.program_id(2) == pl.num_programs(2) - 1)
    def _():
        o_ref[...] = (acc_ref[...] + b_ref[...]).astype(o_ref.dtype)


def pallas_linear(x, w, b=None, *, out_dtype=None):
    """x: (M, K), w: (K, N), b: (N,)|None -> (M, N).

    Inputs are cast to bf16 inside the kernel (MXU), accumulation in f32.
    Pre-cast weights to bf16 once at parameter-prep time to avoid an extra
    HBM pass (see prepare_params).
    """
    M, K = x.shape
    N = w.shape[1]
    out_dtype = x.dtype if out_dtype is None else out_dtype

    tm = _pick_tile(M, _TM, 16)      # sublane axis (16 covers bf16 packing)
    tn = _pick_tile(N, _TN, 128)     # lane axis
    tk = K if K <= 2048 else _pick_tile(K, _TK, 128)
    grid = (M // tm, N // tn, K // tk)

    in_specs = [
        pl.BlockSpec((tm, tk), lambda i, j, k: (i, k)),
        pl.BlockSpec((tk, tn), lambda i, j, k: (k, j)),
    ]
    args = [x, w]
    kernel = _linear_kernel
    if b is not None:
        in_specs.append(pl.BlockSpec((1, tn), lambda i, j, k: (0, j)))
        args.append(b.reshape(1, N).astype(jnp.float32))
        kernel = _linear_bias_kernel

    return pl.pallas_call(
        kernel,
        out_shape=jax.ShapeDtypeStruct((M, N), out_dtype),
        grid=grid,
        in_specs=in_specs,
        out_specs=pl.BlockSpec((tm, tn), lambda i, j, k: (i, j)),
        scratch_shapes=[pltpu.VMEM((tm, tn), jnp.float32)],
        compiler_params=pltpu.CompilerParams(
            dimension_semantics=("parallel", "parallel", "arbitrary"),
            vmem_limit_bytes=_vmem_limit_bytes(),
        ),
    )(*args)


# ----------------------------- attention kernel ------------------------------

def _flash_attn_kernel(q_ref, kv_ref, o_ref, m_sc, l_sc, acc_sc,
                       *, scale, heads, dim_head):
    # q_ref : (tq, heads*dim_head)       bf16   (resident across kv steps)
    # kv_ref: (tk, 2*heads*dim_head)     bf16   [:, :inner]=k, [:, inner:]=v
    # o_ref : (tq, heads*dim_head)       bf16   (written once at last kv step)
    # m_sc  : (heads, tq, 1)  f32  running max
    # l_sc  : (heads, tq, 1)  f32  running denom
    # acc_sc: (heads, tq, d)  f32  running weighted sum of v
    ki = pl.program_id(2)
    inner = heads * dim_head

    @pl.when(ki == 0)
    def _():
        m_sc[...] = jnp.full_like(m_sc, -jnp.inf)
        l_sc[...] = jnp.zeros_like(l_sc)
        acc_sc[...] = jnp.zeros_like(acc_sc)

    # Fold the softmax scale into q: tq*inner VALU mults instead of tq*tk
    # per head on the score tile.
    q_all = (q_ref[...] * scale).astype(jnp.bfloat16)

    # Short static loop over heads; every live intermediate is a (tq, tk) tile.
    for h in range(heads):
        lo = h * dim_head
        q = q_all[:, lo:lo + dim_head]                       # (tq, d)
        k = kv_ref[:, lo:lo + dim_head]                      # (tk, d)
        v = kv_ref[:, inner + lo:inner + lo + dim_head]      # (tk, d)

        # q @ k^T without materializing the transpose (contract last dims).
        s = lax.dot_general(
            q, k, (((1,), (1,)), ((), ())),
            preferred_element_type=jnp.float32,
        )                                                    # (tq, tk) f32

        m_prev = m_sc[h]                                     # (tq, 1)
        m_new = jnp.maximum(m_prev, s.max(axis=-1, keepdims=True))
        alpha = jnp.exp(m_prev - m_new)
        p = jnp.exp(s - m_new)

        l_sc[h] = alpha * l_sc[h] + p.sum(axis=-1, keepdims=True)
        acc_sc[h] = alpha * acc_sc[h] + jnp.dot(
            p.astype(jnp.bfloat16), v, preferred_element_type=jnp.float32
        )
        m_sc[h] = m_new

    @pl.when(ki == pl.num_programs(2) - 1)
    def _():
        outs = []
        for h in range(heads):
            inv_l = pl.reciprocal(l_sc[h], approx=True)
            outs.append((acc_sc[h] * inv_l).astype(o_ref.dtype))
        # Single lane-dense (tq, heads*dim_head) store per query tile.
        o_ref[...] = jnp.concatenate(outs, axis=-1)


# ----------------------------- forward wrapper -------------------------------

def prepare_params(params):
    """One-time parameter prep: weights to bf16 (MXU), bias kept f32."""
    return {
        "wq": params["wq"].astype(jnp.bfloat16),
        "wkv": params["wkv"].astype(jnp.bfloat16),
        "wo": params["wo"].astype(jnp.bfloat16),
        "bo": params["bo"].astype(jnp.float32),
    }


def attention_forward(x, params, *, heads, dim_head, context=None):
    """Equivalent of Attention.forward(x, context=None, mask=None)."""
    b, n, query_dim = x.shape
    ctx = x if context is None else context
    m = ctx.shape[1]
    inner = heads * dim_head
    scale = dim_head ** -0.5

    # Projections. Outputs kept in bf16 to halve HBM traffic into attention.
    q = pallas_linear(x.reshape(b * n, -1), params["wq"], out_dtype=jnp.bfloat16)
    kv = pallas_linear(ctx.reshape(b * m, -1), params["wkv"], out_dtype=jnp.bfloat16)

    # 'b n (h d)' stays packed on the lane axis — no transpose, no kv slice/copy.
    q3 = q.reshape(b, n, inner)
    kv3 = kv.reshape(b, m, 2 * inner)     # [..., :inner]=k, [..., inner:]=v

    tq = _pick_tile(n, _TQ, 16)
    tk = _pick_tile(m, _TKV, 16)
    grid = (b, n // tq, m // tk)

    attn_out = pl.pallas_call(
        functools.partial(
            _flash_attn_kernel, scale=scale, heads=heads, dim_head=dim_head
        ),
        out_shape=jax.ShapeDtypeStruct((b, n, inner), jnp.bfloat16),
        grid=grid,
        in_specs=[
            pl.BlockSpec((None, tq, inner), lambda bi, qi, ki: (bi, qi, 0)),
            pl.BlockSpec((None, tk, 2 * inner), lambda bi, qi, ki: (bi, ki, 0)),
        ],
        out_specs=pl.BlockSpec((None, tq, inner), lambda bi, qi, ki: (bi, qi, 0)),
        scratch_shapes=[
            pltpu.VMEM((heads, tq, 1), jnp.float32),          # running max
            pltpu.VMEM((heads, tq, 1), jnp.float32),          # running denom
            pltpu.VMEM((heads, tq, dim_head), jnp.float32),   # running acc
        ],
        compiler_params=pltpu.CompilerParams(
            dimension_semantics=("parallel", "parallel", "arbitrary"),
            vmem_limit_bytes=_vmem_limit_bytes(),
        ),
    )(q3, kv3)

    # '(b h) n d -> b n (h d)' is already contiguous: no transpose needed.
    y = pallas_linear(
        attn_out.reshape(b * n, inner), params["wo"], params["bo"],
        out_dtype=x.dtype,
    )
    return y.reshape(b, n, query_dim)


# ----------------------------- reference (plain JAX, f32) --------------------

def attention_reference(x, params, *, heads, dim_head, context=None):
    b, n, _ = x.shape
    ctx = x if context is None else context
    m = ctx.shape[1]
    inner = heads * dim_head
    scale = dim_head ** -0.5
    q = x @ params["wq"]
    kv = ctx @ params["wkv"]
    k, v = kv[..., :inner], kv[..., inner:]
    qh = q.reshape(b, n, heads, dim_head).transpose(0, 2, 1, 3)
    kh = k.reshape(b, m, heads, dim_head).transpose(0, 2, 1, 3)
    vh = v.reshape(b, m, heads, dim_head).transpose(0, 2, 1, 3)
    sim = jnp.einsum("bhid,bhjd->bhij", qh, kh) * scale
    attn = jax.nn.softmax(sim, axis=-1)
    out = jnp.einsum("bhij,bhjd->bhid", attn, vh)
    out = out.transpose(0, 2, 1, 3).reshape(b, n, inner)
    return out @ params["wo"] + params["bo"]


# ----------------------------- main -------------------------------------------

if __name__ == "__main__":
    # small shapes consistent with the module
    batch, seq, ctx_seq = 2, 8, 16
    query_dim, context_dim = 32, 32
    heads, dim_head = 2, 16
    inner_dim = heads * dim_head

    key = jax.random.PRNGKey(0)
    k_x, k_c, k_q, k_kv, k_o, k_b = jax.random.split(key, 6)

    x = jax.random.normal(k_x, (batch, seq, query_dim), dtype=jnp.float32)
    context = jax.random.normal(k_c, (batch, ctx_seq, context_dim), dtype=jnp.float32)

    # deterministic parameter init (Linear-style uniform scaling)
    params = {
        "wq": jax.random.uniform(
            k_q, (query_dim, inner_dim), jnp.float32, -1.0, 1.0
        ) / jnp.sqrt(query_dim),
        "wkv": jax.random.uniform(
            k_kv, (context_dim, 2 * inner_dim), jnp.float32, -1.0, 1.0
        ) / jnp.sqrt(context_dim),
        "wo": jax.random.uniform(
            k_o, (inner_dim, query_dim), jnp.float32, -1.0, 1.0
        ) / jnp.sqrt(inner_dim),
        "bo": jax.random.uniform(
            k_b, (query_dim,), jnp.float32, -1.0, 1.0
        ) / jnp.sqrt(inner_dim),
    }

    # One-time weight prep (bf16) — avoids per-call astype HBM passes.
    params_dev = prepare_params(params)

    y = attention_forward(
        x, params_dev, heads=heads, dim_head=dim_head, context=context
    )
    y = jax.block_until_ready(y)

    y_ref = attention_reference(
        x, params, heads=heads, dim_head=dim_head, context=context
    )
    assert y.shape == (batch, seq, query_dim)
    # bf16 MXU inputs with f32 accumulation + approx reciprocal in the softmax
    # denominator -> loosened tolerance vs the f32 reference.
    assert jnp.allclose(y, y_ref, atol=2e-2, rtol=2e-2)

    print("KERNEL_OK")
</pallas_src>

<mosaic_0001>
module attributes {stable_mosaic.version = 11 : i64} {
  func.func @_linear_kernel(%arg0: i32, %arg1: i32, %arg2: i32, %arg3: memref<16x32xf32, #tpu.memory_space<vmem>>, %arg4: memref<32x32xbf16, #tpu.memory_space<vmem>>, %arg5: memref<16x32xbf16, #tpu.memory_space<vmem>>, %arg6: memref<16x32xf32, #tpu.memory_space<vmem>>) attributes {dimension_semantics = [#tpu.dimension_semantics<parallel>, #tpu.dimension_semantics<parallel>, #tpu.dimension_semantics<arbitrary>], iteration_bounds = array<i64: 1, 1, 1>, scalar_prefetch = 0 : i64, scratch_operands = 1 : i64, tpu.core_type = #tpu.core_type<tc>, window_params = [{transform_indices = @transform_0, window_bounds = array<i64: 16, 32>}, {transform_indices = @transform_1, window_bounds = array<i64: 32, 32>}, {transform_indices = @transform_2, window_bounds = array<i64: 16, 32>}]} {
    %c0_i32 = arith.constant 0 : i32
    %0 = arith.cmpi eq, %arg2, %c0_i32 : i32
    %1 = arith.extui %0 : i1 to i32
    %c0_i32_0 = arith.constant 0 : i32
    %2 = arith.cmpi ne, %1, %c0_i32_0 : i32
    scf.if %2 {
      %cst_10 = arith.constant 0.000000e+00 : f32
      %13 = vector.broadcast %cst_10 : f32 to vector<16x32xf32>
      %c0_11 = arith.constant 0 : index
      %c0_12 = arith.constant 0 : index
      %14 = vector.load %arg6[%c0_11, %c0_12] : memref<16x32xf32, #tpu.memory_space<vmem>>, vector<16x32xf32>
      tpu.vector_store %arg6[%c0_11, %c0_12], %13 {strides = array<i32>} : memref<16x32xf32, #tpu.memory_space<vmem>>, vector<16x32xf32>,
    } else {
    }
    %c0 = arith.constant 0 : index
    %c0_1 = arith.constant 0 : index
    %3 = vector.load %arg6[%c0, %c0_1] : memref<16x32xf32, #tpu.memory_space<vmem>>, vector<16x32xf32>
    %c0_2 = arith.constant 0 : index
    %c0_3 = arith.constant 0 : index
    %4 = vector.load %arg3[%c0_2, %c0_3] : memref<16x32xf32, #tpu.memory_space<vmem>>, vector<16x32xf32>
    %5 = arith.truncf %4 : vector<16x32xf32> to vector<16x32xbf16>
    %c0_4 = arith.constant 0 : index
    %c0_5 = arith.constant 0 : index
    %6 = vector.load %arg4[%c0_4, %c0_5] : memref<32x32xbf16, #tpu.memory_space<vmem>>, vector<32x32xbf16>
    %cst = arith.constant dense<0.000000e+00> : vector<16x32xf32>
    %7 = tpu.matmul %5, %6, %cst {dimension_numbers = #tpu.dot_dimension_numbers<[1], [0], [0], [1], [0, 0, 1, 1], [], []>} : vector<16x32xbf16>, vector<32x32xbf16>, vector<16x32xf32> -> vector<16x32xf32>
    %8 = arith.addf %3, %7 : vector<16x32xf32>
    %c0_6 = arith.constant 0 : index
    %c0_7 = arith.constant 0 : index
    %9 = vector.load %arg6[%c0_6, %c0_7] : memref<16x32xf32, #tpu.memory_space<vmem>>, vector<16x32xf32>
    tpu.vector_store %arg6[%c0_6, %c0_7], %8 {strides = array<i32>} : memref<16x32xf32, #tpu.memory_space<vmem>>, vector<16x32xf32>,
    %c0_i32_8 = arith.constant 0 : i32
    %10 = arith.cmpi eq, %arg2, %c0_i32_8 : i32
    %11 = arith.extui %10 : i1 to i32
    %c0_i32_9 = arith.constant 0 : i32
    %12 = arith.cmpi ne, %11, %c0_i32_9 : i32
    scf.if %12 {
      %c0_10 = arith.constant 0 : index
      %c0_11 = arith.constant 0 : index
      %13 = vector.load %arg6[%c0_10, %c0_11] : memref<16x32xf32, #tpu.memory_space<vmem>>, vector<16x32xf32>
      %14 = arith.truncf %13 : vector<16x32xf32> to vector<16x32xbf16>
      %c0_12 = arith.constant 0 : index
      %c0_13 = arith.constant 0 : index
      %15 = vector.load %arg5[%c0_12, %c0_13] : memref<16x32xbf16, #tpu.memory_space<vmem>>, vector<16x32xbf16>
      tpu.vector_store %arg5[%c0_12, %c0_13], %14 {strides = array<i32>} : memref<16x32xbf16, #tpu.memory_space<vmem>>, vector<16x32xbf16>,
    } else {
    }
    return
  }
  func.func @transform_0(%arg0: i32, %arg1: i32, %arg2: i32) -> (i32, i32) {
    %c0_i32 = arith.constant 0 : i32
    return %arg0, %arg2 : i32, i32
  }
  func.func @transform_1(%arg0: i32, %arg1: i32, %arg2: i32) -> (i32, i32) {
    %c0_i32 = arith.constant 0 : i32
    return %arg2, %arg1 : i32, i32
  }
  func.func @transform_2(%arg0: i32, %arg1: i32, %arg2: i32) -> (i32, i32) {
    %c0_i32 = arith.constant 0 : i32
    return %arg0, %arg1 : i32, i32
  }
}

</mosaic_0001>

<llo_original>
// kernel: tpu_custom_call.1
$region0: #{tpu_custom_call.1}
  #allocation0 [shape = 'u32[]', space=smem, size = 0x4, offset = 0x4, fixed_abs, tag = 'smem constant byte address 0x4 - core index']
  #allocation1 [shape = 'u32[144,128]{1,0:T(1,128)}', space=vmem, size = 0x12000, scoped, tag = 'internal scratch']
  #allocation2 [shape = 'f32[16,32]{1,0:T(8,128)}', space=vmem, size = 0x2000, scoped, tag = 'scratch operand']
  %s0 = inlined_call_operand.hbm [shape: f32[16,32], index: 0, kind: input, shape index: {}]
  %s1 = inlined_call_operand.hbm [shape: bf16[32,32], index: 1, kind: input, shape index: {}]
  %s2 = inlined_call_operand.hbm [shape: bf16[16,32], index: 2, kind: output, shape index: {}]
  %s3 = sld [smem:[#allocation0]]
  $region34: #{tpu_custom_call.1} parent=0
    _
  %s5 = ssub.s32 1, %s3
  %s6 = scalar_select 0, %s5, %s3
  $region1: #{tpu_custom_call.1} parent=0
    #allocation3 [shape = 'u8[8192]{0}', space=vmem, size = 0x2000, scoped, tag = 'input window, operand 0, single buffered']
    #allocation4 [shape = 's32[1]{0}', space=sflag, size = 0x4, scoped, tag = 'scoped memory for tpu_custom_call.1']
    #allocation5 [shape = 's32[1]{0}', space=sflag, size = 0x4, scoped, tag = 'scoped memory for tpu_custom_call.1']
    #allocation6 [shape = 'u8[8192]{0}', space=vmem, size = 0x2000, scoped, tag = 'input window, operand 1, single buffered']
    #allocation7 [shape = 's32[1]{0}', space=sflag, size = 0x4, scoped, tag = 'scoped memory for tpu_custom_call.1']
    #allocation8 [shape = 'u8[4096]{0}', space=vmem, size = 0x1000, scoped, tag = 'output window, operand 0, single buffered']
    %7 = vsyncpa [#allocation4], 0
    %8 = vsyncpa [#allocation7], 0
    %9 = vsyncpa [#allocation5], 0
    // Predicated region
    $region2: #{tpu_custom_call.1} parent=1 // pred_check
      _
    $region3: #{tpu_custom_call.1} parent=1 // pred_check_branch
      %11 = sbr.rel (0) target = $region5
    $region4: #{tpu_custom_call.1} parent=1 // pred_region
      %s13 = ssub.s32 256, 256
      %14 = vsyncadd [#allocation4], %s13
      %s15 = sshll.u32 [#allocation3], 4
      %s16 = int_to_ptr.vmem [resolvable:$true] %s15
      %21 = dma.hbm_to_vmem [thread:$0]  %s0, 256, %s16, [#allocation4], 128, 128, 8
    $region5: #{tpu_custom_call.1} parent=1 // pred_fallthru
      _
    // Predicated region
    $region6: #{tpu_custom_call.1} parent=1 // pred_check
      _
    $region7: #{tpu_custom_call.1} parent=1 // pred_check_branch
      %23 = sbr.rel (0) target = $region9
    $region8: #{tpu_custom_call.1} parent=1 // pred_region
      %s25 = ssub.s32 256, 256
      %26 = vsyncadd [#allocation7], %s25
      %s27 = sshll.u32 [#allocation6], 4
      %s28 = int_to_ptr.vmem [resolvable:$true] %s27
      %33 = dma.hbm_to_vmem [thread:$0]  %s1, 256, %s28, [#allocation7], 64, 64, 4
    $region9: #{tpu_custom_call.1} parent=1 // pred_fallthru
      _
    // Predicated region
    $region10: #{tpu_custom_call.1} parent=1 // pred_check
      _
    $region11: #{tpu_custom_call.1} parent=1 // pred_check_branch
      %35 = sbr.rel (0) target = $region13
    $region12: #{tpu_custom_call.1} parent=1 // pred_region
      %36 = dma.done [#allocation4], 256
    $region13: #{tpu_custom_call.1} parent=1 // pred_fallthru
      _
    // Predicated region
    $region14: #{tpu_custom_call.1} parent=1 // pred_check
      _
    $region15: #{tpu_custom_call.1} parent=1 // pred_check_branch
      %38 = sbr.rel (0) target = $region17
    $region16: #{tpu_custom_call.1} parent=1 // pred_region
      %39 = dma.done [#allocation7], 256
    $region17: #{tpu_custom_call.1} parent=1 // pred_fallthru
      _
    %p41 = scmp.eq.s32.totalorder 0, 0
    // Predicated region
    $region18: #{tpu_custom_call.1} parent=1 // pred_check
      %p42 = pneg %p41
    $region19: #{tpu_custom_call.1} parent=1 // pred_check_branch
      %44 = sbr.rel (%p42) target = $region21
    $region20: #{tpu_custom_call.1} parent=1 // pred_region
      %vm45 = vcmask 261120
      %46 = vst.msk [vmem:[#allocation2] sm:$0xff] %vm45, 0.0
      %47 = vst.msk [vmem:[#allocation2 + $0x8] sm:$0xff] %vm45, 0.0
    $region21: #{tpu_custom_call.1} parent=1 // pred_fallthru
      _
    %v48 = vld [vmem:[#allocation2] sm:$0xff]
    %v49 = vld [vmem:[#allocation2 + $0x8] sm:$0xff]
    %v50 = vld [vmem:[#allocation3] sm:$0xff]
    %v51 = vld [vmem:[#allocation3 + $0x8] sm:$0xff]
    %v52 = vpack.c.bf16 %v51, %v50
    %v53 = vld [vmem:[#allocation6] sm:$0xf]
    %v54 = vld [vmem:[#allocation6 + $0x4] sm:$0xf]
    %v55 = vld [vmem:[#allocation6 + $0x8] sm:$0xf]
    %v56 = vld [vmem:[#allocation6 + $0xc] sm:$0xf]
    %v61 = vunpack.c.l.b16 %v53
    %v62 = vunpack.c.l.b16 %v54
    %v63 = vunpack.c.l.b16 %v55
    %v64 = vunpack.c.l.b16 %v56
    %v65 = vpack.c.b16 %v62, %v61
    %v66 = vpack.c.b16 %v64, %v63
    %vm69 = vcmask 261120
    %v71 = vsel %vm69, %v52, 0
    %73 = vmatprep.subr.bf16.mxu0 0
    %74 = vmatpush1.bf16.msra.mxu0 %v65
    %75 = vmatprep.subr.bf16.mxu0 0
    %76 = vmatpush1.bf16.msra.mxu0 %v66
    %77 = vmatprep.subr.bf16.mxu0 0
    %78 = vmatpush1.bf16.msra.mxu0 0
    %79 = vmatprep.subr.bf16.mxu0 0
    %80 = vmatpush1.bf16.msra.mxu0 0
    %81 = vmatprep.subr.bf16.mxu0 0
    %82 = vmatpush1.bf16.msra.mxu0 0
    %83 = vmatprep.subr.bf16.mxu0 0
    %84 = vmatpush1.bf16.msra.mxu0 0
    %85 = vmatprep.subr.bf16.mxu0 0
    %86 = vmatpush1.bf16.msra.mxu0 0
    %87 = vmatprep.subr.bf16.mxu0 0
    %88 = vmatpush1.bf16.msra.mxu0 0
    %89 = vmatprep.subr.bf16.mxu0 0
    %90 = vmatpush1.bf16.msra.mxu0 0
    %91 = vmatprep.subr.bf16.mxu0 0
    %92 = vmatpush1.bf16.msra.mxu0 0
    %93 = vmatprep.subr.bf16.mxu0 0
    %94 = vmatpush1.bf16.msra.mxu0 0
    %95 = vmatprep.subr.bf16.mxu0 0
    %96 = vmatpush1.bf16.msra.mxu0 0
    %97 = vmatprep.subr.bf16.mxu0 0
    %98 = vmatpush1.bf16.msra.mxu0 0
    %99 = vmatprep.subr.bf16.mxu0 0
    %100 = vmatpush1.bf16.msra.mxu0 0
    %101 = vmatprep.subr.bf16.mxu0 0
    %102 = vmatpush1.bf16.msra.mxu0 0
    %103 = vmatprep.subr.bf16.mxu0 0
    %104 = vmatpush1.bf16.msra.mxu0 0
    %105 = vmatprep.mubr.bf16.mxu0 0
    %106 = vmatmul.mubr.bf16.gmra.mrb[0].mxu0 %v71
    %v107 = vpop.f32.mrb[0].mxu0
    %v108 = vadd.f32 0.0, %v107
    %v109 = vpop.f32.mrb[0].mxu0
    %v110 = vpop.f32.mrb[0].mxu0
    %v111 = vadd.f32 0.0, %v110
    %v112 = vpop.f32.mrb[0].mxu0
    %113 = vdwg.mxu0
    %v114 = vadd.f32 %v48, %v108
    %v115 = vadd.f32 %v49, %v111
    %116 = vst.msk [vmem:[#allocation2] sm:$0xff] %vm69, %v114
    %117 = vst.msk [vmem:[#allocation2 + $0x8] sm:$0xff] %vm69, %v115
    // Predicated region
    $region22: #{tpu_custom_call.1} parent=1 // pred_check
      %p118 = pneg %p41
    $region23: #{tpu_custom_call.1} parent=1 // pred_check_branch
      %120 = sbr.rel (%p118) target = $region25
    $region24: #{tpu_custom_call.1} parent=1 // pred_region
      %v121 = vld [vmem:[#allocation2] sm:$0xff]
      %v122 = vld [vmem:[#allocation2 + $0x8] sm:$0xff]
      %v123 = vpack.c.bf16 %v122, %v121
      %v125 = vunpack.c.l.b16 %v123
      %v126 = vunpack.c.h.b16 %v123
      %v127 = vpack.c.b16 %v125, %v125
      %v128 = vpack.c.b16 %v126, %v126
      %vm131 = vcmask 257024
      %132 = vst.msk [vmem:[#allocation8] sm:$0xf] %vm131, %v127
      %133 = vst.msk [vmem:[#allocation8 + $0x4] sm:$0xf] %vm131, %v128
    $region25: #{tpu_custom_call.1} parent=1 // pred_fallthru
      _
    // Predicated region
    $region26: #{tpu_custom_call.1} parent=1 // pred_check
      _
    $region27: #{tpu_custom_call.1} parent=1 // pred_check_branch
      %135 = sbr.rel (0) target = $region29
    $region28: #{tpu_custom_call.1} parent=1 // pred_region
      %s137 = ssub.s32 128, 128
      %138 = vsyncadd [#allocation5], %s137
      %s139 = sshll.u32 [#allocation8], 4
      %s140 = int_to_ptr.vmem [resolvable:$true] %s139
      %145 = dma.vmem_to_hbm [thread:$0]  %s140, 128, %s2, [#allocation5], 64, 64, 4
    $region29: #{tpu_custom_call.1} parent=1 // pred_fallthru
      _
    // Predicated region
    $region30: #{tpu_custom_call.1} parent=1 // pred_check
      _
    $region31: #{tpu_custom_call.1} parent=1 // pred_check_branch
      %147 = sbr.rel (0) target = $region33
    $region32: #{tpu_custom_call.1} parent=1 // pred_region
      %148 = dma.done [#allocation5], 128
    $region33: #{tpu_custom_call.1} parent=1 // pred_fallthru
      _
    %149 = vsyncpa [#allocation4], 1
    %150 = vsyncpa [#allocation7], 1
    %151 = vsyncpa [#allocation5], 1

</llo_original>
